<compile_context>
chip_gen: v7x
topology: tpu7x:2x2x1
jax: 0.10.0
libtpu: 0.0.40
codegen_flags: <defaults>
</compile_context>

<pallas_src>
import functools

import jax
import jax.numpy as jnp
from jax.experimental import pallas as pl
from jax.experimental.pallas import tpu as pltpu

# Tile knobs (multiples of 8 sublanes / 128 lanes).  Sized so the resident set
# (double-buffered bf16 x/W tiles + double-buffered f32 output + f32 acc) stays
# well under v7x's 64 MiB physical VMEM; larger-VMEM chips raise TM below.
_M_TILE_MAX_SMALL_VMEM = 512    # v7x (64 MiB)
_M_TILE_MAX_LARGE_VMEM = 1024   # v5e / v6e (128 MiB): halves W re-streaming
_N_TILE_MAX = 512               # >= 256 to match the 256x256 MXU on v6e/v7x
_K_TILE_MAX = 2048

_COMPUTE_DTYPE = jnp.bfloat16   # MXU-native operand dtype; accumulation is f32


def _round_up(x: int, m: int) -> int:
    return (x + m - 1) // m * m


def _pad_geometry(h_in: int, h_out: int):
    """Padded K/N extents (and base tiles) shared by param prep and forward."""
    kp = _round_up(h_in, 128)
    tk = kp if kp <= _K_TILE_MAX else _K_TILE_MAX
    kp = _round_up(kp, tk)
    np_ = _round_up(h_out, 128)
    tn = np_ if np_ <= _N_TILE_MAX else _N_TILE_MAX
    np_ = _round_up(np_, tn)
    return kp, tk, np_, tn


def _vmem_capacity_bytes() -> int:
    """Trace-time VMEM capacity query; conservative 64 MiB fallback."""
    try:
        info = pltpu.get_tpu_info()
        return int(getattr(info, "vmem_capacity_bytes", 64 * 1024 * 1024))
    except Exception:  # noqa: BLE001 - any failure -> assume smallest VMEM
        return 64 * 1024 * 1024


# ----------------------------- kernels --------------------------------------


def _td_linear_kernel_1k(x_ref, w_ref, b_ref, o_ref):
    """Single K step: no accumulator round trip, fused bias add + cast."""
    o_ref[...] = (
        jnp.dot(x_ref[...], w_ref[...], preferred_element_type=jnp.float32)
        + b_ref[...]
    ).astype(o_ref.dtype)


def _td_linear_kernel_mk(x_ref, w_ref, b_ref, o_ref, acc_ref):
    """Multi K step: f32 accumulator, bias add only in the finalize branch."""
    k = pl.program_id(2)

    @pl.when(k == 0)
    def _():
        acc_ref[...] = jnp.zeros_like(acc_ref)

    acc_ref[...] += jnp.dot(
        x_ref[...], w_ref[...], preferred_element_type=jnp.float32
    )

    @pl.when(k == pl.num_programs(2) - 1)
    def _():
        o_ref[...] = (acc_ref[...] + b_ref[...]).astype(o_ref.dtype)


# ----------------------------- wrappers --------------------------------------


def prepare_linear_params(weight, bias):
    """One-time prep of nn.Linear params (pad + transpose + bf16 cast).

    weight: (H_out, H_in) as stored by nn.Linear; bias: (H_out,).
    Returns w_p (Kp, Np) in the bf16 compute dtype and b_p (1, Np) f32; the
    zero padding keeps the kernel math exact.
    """
    h_out, h_in = weight.shape
    kp, _, np_, _ = _pad_geometry(h_in, h_out)
    w_t = weight.T.astype(_COMPUTE_DTYPE)  # (H_in, H_out)
    w_p = jnp.zeros((kp, np_), _COMPUTE_DTYPE).at[:h_in, :h_out].set(w_t)
    b_p = jnp.zeros((1, np_), jnp.float32).at[0, :h_out].set(
        bias.astype(jnp.float32)
    )
    return w_p, b_p


@functools.partial(jax.jit, static_argnames=("h_out",))
def time_distributed_linear(x, w_p, b_p, *, h_out):
    """TimeDistributed(Linear) forward.

    x:   (B, T, ..., H_in)  (any number >= 0 of extra dims before H_in)
    w_p: (Kp, Np) padded bf16 weight from prepare_linear_params
    b_p: (1, Np)  padded f32 bias
    returns: x.shape[:-1] + (h_out,), in x.dtype
    """
    assert x.ndim > 2  # TimeDistributed contract
    h_in = x.shape[-1]
    lead = x.shape[:-1]
    M = 1
    for d in lead:
        M *= d

    kp, tk, np_, tn = _pad_geometry(h_in, h_out)
    assert w_p.shape == (kp, np_) and b_p.shape == (1, np_)

    # M tile: bigger on 128 MiB chips to amortize weight re-streaming.
    vmem_cap = _vmem_capacity_bytes()
    m_tile_max = (
        _M_TILE_MAX_LARGE_VMEM
        if vmem_cap >= 100 * 1024 * 1024
        else _M_TILE_MAX_SMALL_VMEM
    )
    tm = min(m_tile_max, _round_up(M, 8))
    mp = _round_up(M, tm)

    # v7x megacore: ensure >= 2 blocks on a parallel axis when M fits one tile.
    if mp // tm == 1 and np_ // tn == 1 and tn % 256 == 0:
        tn //= 2

    m_tiles, n_tiles, k_tiles = mp // tm, np_ // tn, kp // tk
    out_dtype = x.dtype

    # Glue: fold leading dims, cast to the bf16 compute dtype, pad only if
    # actually needed (XLA fuses the cast + pad into a single pass).
    x_flat = x.reshape((M, h_in)).astype(_COMPUTE_DTYPE)
    if (mp, kp) != (M, h_in):
        x_flat = jnp.pad(x_flat, ((0, mp - M), (0, kp - h_in)))

    cdt = jnp.dtype(_COMPUTE_DTYPE).itemsize
    odt = jnp.dtype(out_dtype).itemsize

    # Advisory cost: W is re-streamed from HBM once per M tile (its index_map
    # depends on k/j, both of which vary inside a fixed M tile).
    cost = pl.CostEstimate(
        flops=2 * M * h_in * h_out,
        transcendentals=0,
        bytes_accessed=(
            mp * kp * cdt                # x read once
            + m_tiles * kp * np_ * cdt   # weight re-streamed per M tile
            + np_ * 4                    # bias
            + mp * np_ * odt             # output
        ),
    )

    # VMEM resident set with the real per-buffer dtypes.
    vmem_est = (
        2 * tm * tk * cdt                       # double-buffered x tiles
        + 2 * tk * tn * cdt                     # double-buffered W tiles
        + 2 * tm * tn * odt                     # double-buffered output tiles
        + (tm * tn * 4 if k_tiles > 1 else 0)   # f32 accumulator
        + 2 * tn * 4                            # bias
    )
    vmem_limit = int(
        min(max(2 * vmem_est, 32 * 1024 * 1024), int(0.75 * vmem_cap))
    )

    if k_tiles == 1:
        # Common Linear case (H_in <= TK): no accumulator, no pl.when branches.
        kernel = _td_linear_kernel_1k
        grid = (m_tiles, n_tiles)
        in_specs = [
            pl.BlockSpec((tm, tk), lambda i, j: (i, 0)),  # x tile
            pl.BlockSpec((tk, tn), lambda i, j: (0, j)),  # weight tile
            pl.BlockSpec((1, tn), lambda i, j: (0, j)),   # bias tile
        ]
        out_specs = pl.BlockSpec((tm, tn), lambda i, j: (i, j))
        scratch = []
        dims = ("parallel", "parallel")
    else:
        kernel = _td_linear_kernel_mk
        grid = (m_tiles, n_tiles, k_tiles)  # K innermost (reduction)
        in_specs = [
            pl.BlockSpec((tm, tk), lambda i, j, k: (i, k)),
            pl.BlockSpec((tk, tn), lambda i, j, k: (k, j)),
            pl.BlockSpec((1, tn), lambda i, j, k: (0, j)),
        ]
        out_specs = pl.BlockSpec((tm, tn), lambda i, j, k: (i, j))
        scratch = [pltpu.VMEM((tm, tn), jnp.float32)]
        dims = ("parallel", "parallel", "arbitrary")

    out_flat = pl.pallas_call(
        kernel,
        out_shape=jax.ShapeDtypeStruct((mp, np_), out_dtype),
        grid_spec=pltpu.PrefetchScalarGridSpec(
            num_scalar_prefetch=0,
            grid=grid,
            in_specs=in_specs,
            out_specs=out_specs,
            scratch_shapes=scratch,
        ),
        compiler_params=pltpu.CompilerParams(
            dimension_semantics=dims,
            vmem_limit_bytes=vmem_limit,
        ),
        cost_estimate=cost,
    )(x_flat, w_p, b_p)

    # Glue: drop padding, unfold back to (B, T, ..., H_out).
    return out_flat[:M, :h_out].reshape(lead + (h_out,))


if __name__ == "__main__":
    B, T, H_IN, H_OUT = 2, 8, 32, 32

    key = jax.random.PRNGKey(0)
    kx, kw, kb = jax.random.split(key, 3)

    x = jax.random.normal(kx, (B, T, H_IN), dtype=jnp.float32)

    # Deterministic params (mimics nn.Linear's uniform(-1/sqrt(H_in), +)).
    bound = 1.0 / (H_IN ** 0.5)
    weight = jax.random.uniform(kw, (H_OUT, H_IN), jnp.float32, -bound, bound)
    bias = jax.random.uniform(kb, (H_OUT,), jnp.float32, -bound, bound)

    # One-time parameter prep (transpose + pad + bf16 cast) outside the hot path.
    w_p, b_p = prepare_linear_params(weight, bias)

    out = time_distributed_linear(x, w_p, b_p, h_out=H_OUT)
    jax.block_until_ready(out)

    # Reference (plain f32 JAX).  Operands are bf16 with f32 accumulation in
    # the kernel, so the tolerance is loosened accordingly.
    ref = (x.reshape(B * T, H_IN) @ weight.T + bias).reshape(B, T, H_OUT)
    assert out.shape == (B, T, H_OUT)
    assert out.dtype == x.dtype
    assert jnp.allclose(out, ref, atol=2e-2, rtol=2e-2)

    print("KERNEL_OK")
</pallas_src>

<mosaic_0001>
module attributes {stable_mosaic.version = 11 : i64} {
  func.func @_td_linear_kernel_1k(%arg0: i32, %arg1: i32, %arg2: memref<16x128xbf16, #tpu.memory_space<vmem>>, %arg3: memref<128x128xbf16, #tpu.memory_space<vmem>>, %arg4: memref<1x128xf32, #tpu.memory_space<vmem>>, %arg5: memref<16x128xf32, #tpu.memory_space<vmem>>) attributes {dimension_semantics = [#tpu.dimension_semantics<parallel>, #tpu.dimension_semantics<parallel>], iteration_bounds = array<i64: 1, 1>, scalar_prefetch = 0 : i64, scratch_operands = 0 : i64, tpu.core_type = #tpu.core_type<tc>, window_params = [{transform_indices = @transform_0, window_bounds = array<i64: 16, 128>}, {transform_indices = @transform_1, window_bounds = array<i64: 128, 128>}, {transform_indices = @transform_2, window_bounds = array<i64: 1, 128>}, {transform_indices = @transform_3, window_bounds = array<i64: 16, 128>}]} {
    %c0 = arith.constant 0 : index
    %c0_0 = arith.constant 0 : index
    %0 = vector.load %arg2[%c0, %c0_0] : memref<16x128xbf16, #tpu.memory_space<vmem>>, vector<16x128xbf16>
    %c0_1 = arith.constant 0 : index
    %c0_2 = arith.constant 0 : index
    %1 = vector.load %arg3[%c0_1, %c0_2] : memref<128x128xbf16, #tpu.memory_space<vmem>>, vector<128x128xbf16>
    %cst = arith.constant dense<0.000000e+00> : vector<16x128xf32>
    %2 = tpu.matmul %0, %1, %cst {dimension_numbers = #tpu.dot_dimension_numbers<[1], [0], [0], [1], [0, 0, 1, 1], [], []>} : vector<16x128xbf16>, vector<128x128xbf16>, vector<16x128xf32> -> vector<16x128xf32>
    %c0_3 = arith.constant 0 : index
    %c0_4 = arith.constant 0 : index
    %3 = vector.load %arg4[%c0_3, %c0_4] : memref<1x128xf32, #tpu.memory_space<vmem>>, vector<1x128xf32>
    %4 = vector.broadcast %3 : vector<1x128xf32> to vector<16x128xf32>
    %5 = arith.addf %2, %4 : vector<16x128xf32>
    %c0_5 = arith.constant 0 : index
    %c0_6 = arith.constant 0 : index
    %6 = vector.load %arg5[%c0_5, %c0_6] : memref<16x128xf32, #tpu.memory_space<vmem>>, vector<16x128xf32>
    tpu.vector_store %arg5[%c0_5, %c0_6], %5 {strides = array<i32>} : memref<16x128xf32, #tpu.memory_space<vmem>>, vector<16x128xf32>,
    return
  }
  func.func @transform_0(%arg0: i32, %arg1: i32) -> (i32, i32) {
    %c0_i32 = arith.constant 0 : i32
    %c0_i32_0 = arith.constant 0 : i32
    return %arg0, %c0_i32 : i32, i32
  }
  func.func @transform_1(%arg0: i32, %arg1: i32) -> (i32, i32) {
    %c0_i32 = arith.constant 0 : i32
    %c0_i32_0 = arith.constant 0 : i32
    return %c0_i32, %arg1 : i32, i32
  }
  func.func @transform_2(%arg0: i32, %arg1: i32) -> (i32, i32) {
    %c0_i32 = arith.constant 0 : i32
    %c0_i32_0 = arith.constant 0 : i32
    return %c0_i32, %arg1 : i32, i32
  }
  func.func @transform_3(%arg0: i32, %arg1: i32) -> (i32, i32) {
    %c0_i32 = arith.constant 0 : i32
    return %arg0, %arg1 : i32, i32
  }
}

</mosaic_0001>

<llo_original>
// kernel: time_distributed_linear.1
$region0: #{time_distributed_linear.1}
  #allocation0 [shape = 'u32[]', space=smem, size = 0x4, offset = 0x4, fixed_abs, tag = 'smem constant byte address 0x4 - core index']
  #allocation1 [shape = 'u32[144,128]{1,0:T(1,128)}', space=vmem, size = 0x12000, scoped, tag = 'internal scratch']
  %s0 = inlined_call_operand.vmem [shape: bf16[16,128], index: 0, kind: input, shape index: {}]
  %s1 = inlined_call_operand.hbm [shape: bf16[128,128], index: 1, kind: input, shape index: {}]
  %s2 = inlined_call_operand.vmem [shape: f32[1,128], index: 2, kind: input, shape index: {}]
  %s3 = inlined_call_operand.vmem [shape: f32[16,128], index: 3, kind: output, shape index: {}]
  %s4 = sld [smem:[#allocation0]]
  $region26: #{time_distributed_linear.1} parent=0
    _
  %s6 = ssub.s32 1, %s4
  %s7 = scalar_select 0, %s6, %s4
  $region1: #{time_distributed_linear.1} parent=0
    #allocation2 [shape = 'u8[32768]{0}', space=vmem, size = 0x8000, scoped, tag = 'input window, operand 1, single buffered']
    #allocation3 [shape = 's32[1]{0}', space=sflag, size = 0x4, scoped, tag = 'scoped memory for time_distributed_linear.1']
    %8 = vsyncpa [#allocation3], 0
    // Predicated region
    $region2: #{time_distributed_linear.1} parent=1 // pred_check
      _
    $region3: #{time_distributed_linear.1} parent=1 // pred_check_branch
      %10 = sbr.rel (0) target = $region5
    $region4: #{time_distributed_linear.1} parent=1 // pred_region
      _
    $region5: #{time_distributed_linear.1} parent=1 // pred_fallthru
      _
    // Predicated region
    $region6: #{time_distributed_linear.1} parent=1 // pred_check
      _
    $region7: #{time_distributed_linear.1} parent=1 // pred_check_branch
      %12 = sbr.rel (0) target = $region9
    $region8: #{time_distributed_linear.1} parent=1 // pred_region
      %s14 = ssub.s32 1024, 1024
      %15 = vsyncadd [#allocation3], %s14
      %s16 = sshll.u32 [#allocation2], 4
      %s17 = int_to_ptr.vmem [resolvable:$true] %s16
      %22 = dma.hbm_to_vmem [thread:$0]  %s1, 1024, %s17, [#allocation3], 64, 64, 4
    $region9: #{time_distributed_linear.1} parent=1 // pred_fallthru
      _
    // Predicated region
    $region10: #{time_distributed_linear.1} parent=1 // pred_check
      _
    $region11: #{time_distributed_linear.1} parent=1 // pred_check_branch
      %24 = sbr.rel (0) target = $region13
    $region12: #{time_distributed_linear.1} parent=1 // pred_region
      _
    $region13: #{time_distributed_linear.1} parent=1 // pred_fallthru
      _
    // Predicated region
    $region14: #{time_distributed_linear.1} parent=1 // pred_check
      _
    $region15: #{time_distributed_linear.1} parent=1 // pred_check_branch
      %26 = sbr.rel (0) target = $region17
    $region16: #{time_distributed_linear.1} parent=1 // pred_region
      %27 = dma.done [#allocation3], 1024
    $region17: #{time_distributed_linear.1} parent=1 // pred_fallthru
      _
    %v29 = vld [vmem:[%s0] sm:$0xf]
    %v30 = vld [vmem:[%s0 + $0x4] sm:$0xf]
    %v31 = vld [vmem:[#allocation2] sm:$0xf]
    %v32 = vld [vmem:[#allocation2 + $0x4] sm:$0xf]
    %v33 = vld [vmem:[#allocation2 + $0x8] sm:$0xf]
    %v34 = vld [vmem:[#allocation2 + $0xc] sm:$0xf]
    %v35 = vld [vmem:[#allocation2 + $0x10] sm:$0xf]
    %v36 = vld [vmem:[#allocation2 + $0x14] sm:$0xf]
    %v37 = vld [vmem:[#allocation2 + $0x18] sm:$0xf]
    %v38 = vld [vmem:[#allocation2 + $0x1c] sm:$0xf]
    %v39 = vld [vmem:[#allocation2 + $0x20] sm:$0xf]
    %v40 = vld [vmem:[#allocation2 + $0x24] sm:$0xf]
    %v41 = vld [vmem:[#allocation2 + $0x28] sm:$0xf]
    %v42 = vld [vmem:[#allocation2 + $0x2c] sm:$0xf]
    %v43 = vld [vmem:[#allocation2 + $0x30] sm:$0xf]
    %v44 = vld [vmem:[#allocation2 + $0x34] sm:$0xf]
    %v45 = vld [vmem:[#allocation2 + $0x38] sm:$0xf]
    %v46 = vld [vmem:[#allocation2 + $0x3c] sm:$0xf]
    %v47 = vld [vmem:[%s2] sm:$0x1]
    %v49 = vlaneseq
    %v50 = vshrl.u32 %v49, 7
    %v51 = vsub.s32 0, %v50
    %v52 = vrot.slane %v47, %v51
    %v56 = vunpack.c.l.b16 %v29
    %v57 = vunpack.c.l.b16 %v30
    %v58 = vpack.c.b16 %v57, %v56
    %v76 = vunpack.c.l.b16 %v31
    %v77 = vunpack.c.l.b16 %v32
    %v78 = vunpack.c.l.b16 %v33
    %v79 = vunpack.c.l.b16 %v34
    %v80 = vunpack.c.l.b16 %v35
    %v81 = vunpack.c.l.b16 %v36
    %v82 = vunpack.c.l.b16 %v37
    %v83 = vunpack.c.l.b16 %v38
    %v84 = vunpack.c.l.b16 %v39
    %v85 = vunpack.c.l.b16 %v40
    %v86 = vunpack.c.l.b16 %v41
    %v87 = vunpack.c.l.b16 %v42
    %v88 = vunpack.c.l.b16 %v43
    %v89 = vunpack.c.l.b16 %v44
    %v90 = vunpack.c.l.b16 %v45
    %v91 = vunpack.c.l.b16 %v46
    %v92 = vpack.c.b16 %v77, %v76
    %v93 = vpack.c.b16 %v79, %v78
    %v94 = vpack.c.b16 %v81, %v80
    %v95 = vpack.c.b16 %v83, %v82
    %v96 = vpack.c.b16 %v85, %v84
    %v97 = vpack.c.b16 %v87, %v86
    %v98 = vpack.c.b16 %v89, %v88
    %v99 = vpack.c.b16 %v91, %v90
    %108 = vmatprep.subr.bf16.mxu0 0
    %109 = vmatpush1.bf16.msra.mxu0 %v92
    %110 = vmatprep.subr.bf16.mxu0 0
    %111 = vmatpush1.bf16.msra.mxu0 %v93
    %112 = vmatprep.subr.bf16.mxu0 0
    %113 = vmatpush1.bf16.msra.mxu0 %v94
    %114 = vmatprep.subr.bf16.mxu0 0
    %115 = vmatpush1.bf16.msra.mxu0 %v95
    %116 = vmatprep.subr.bf16.mxu0 0
    %117 = vmatpush1.bf16.msra.mxu0 %v96
    %118 = vmatprep.subr.bf16.mxu0 0
    %119 = vmatpush1.bf16.msra.mxu0 %v97
    %120 = vmatprep.subr.bf16.mxu0 0
    %121 = vmatpush1.bf16.msra.mxu0 %v98
    %122 = vmatprep.subr.bf16.mxu0 0
    %123 = vmatpush1.bf16.msra.mxu0 %v99
    %124 = vmatprep.subr.bf16.mxu0 0
    %125 = vmatpush1.bf16.msra.mxu0 0
    %126 = vmatprep.subr.bf16.mxu0 0
    %127 = vmatpush1.bf16.msra.mxu0 0
    %128 = vmatprep.subr.bf16.mxu0 0
    %129 = vmatpush1.bf16.msra.mxu0 0
    %130 = vmatprep.subr.bf16.mxu0 0
    %131 = vmatpush1.bf16.msra.mxu0 0
    %132 = vmatprep.subr.bf16.mxu0 0
    %133 = vmatpush1.bf16.msra.mxu0 0
    %134 = vmatprep.subr.bf16.mxu0 0
    %135 = vmatpush1.bf16.msra.mxu0 0
    %136 = vmatprep.subr.bf16.mxu0 0
    %137 = vmatpush1.bf16.msra.mxu0 0
    %138 = vmatprep.subr.bf16.mxu0 0
    %139 = vmatpush1.bf16.msra.mxu0 0
    %140 = vmatprep.mubr.bf16.mxu0 0
    %141 = vmatmul.mubr.bf16.gmra.mrb[0].mxu0 %v58
    %v142 = vpop.f32.mrb[0].mxu0
    %v143 = vadd.f32 %v52, %v142
    %v144 = vpop.f32.mrb[0].mxu0
    %v145 = vpop.f32.mrb[0].mxu0
    %v146 = vadd.f32 %v52, %v145
    %v147 = vpop.f32.mrb[0].mxu0
    %148 = vdwg.mxu0
    %149 = vst [vmem:[%s3] sm:$0xff] %v143
    %150 = vst [vmem:[%s3 + $0x8] sm:$0xff] %v146
    // Predicated region
    $region18: #{time_distributed_linear.1} parent=1 // pred_check
      _
    $region19: #{time_distributed_linear.1} parent=1 // pred_check_branch
      %152 = sbr.rel (0) target = $region21
    $region20: #{time_distributed_linear.1} parent=1 // pred_region
      _
    $region21: #{time_distributed_linear.1} parent=1 // pred_fallthru
      _
    // Predicated region
    $region22: #{time_distributed_linear.1} parent=1 // pred_check
      _
    $region23: #{time_distributed_linear.1} parent=1 // pred_check_branch
      %154 = sbr.rel (0) target = $region25
    $region24: #{time_distributed_linear.1} parent=1 // pred_region
      _
    $region25: #{time_distributed_linear.1} parent=1 // pred_fallthru
      _
    %155 = vsyncpa [#allocation3], 1

</llo_original>
